<compile_context>
chip_gen: v6e
topology: v6e:2x2x1
jax: 0.10.0
libtpu: 0.0.40
codegen_flags: <defaults>
</compile_context>

<pallas_src>
import functools

import jax
import jax.numpy as jnp
from jax.experimental import pallas as pl
from jax.experimental.pallas import tpu as pltpu


def _round_up(x, m):
    return ((x + m - 1) // m) * m


def _cdiv(a, b):
    return (a + b - 1) // b


def mlp_readout_kernel(x_ref, w1_ref, b1_ref, w2_ref, b2_ref, w3_ref, b3_ref, o_ref):
    # Cast the x tile to the matmul compute dtype in-kernel (no standalone XLA
    # convert pass over x in HBM).
    x = x_ref[...].astype(w1_ref.dtype)
    # Layer 0: Linear + ReLU (MXU matmul, f32 accumulation)
    y = jnp.dot(x, w1_ref[...], preferred_element_type=jnp.float32)
    y = jnp.maximum(y + b1_ref[...], 0.0)
    # Layer 1: Linear + ReLU
    y = jnp.dot(y.astype(w2_ref.dtype), w2_ref[...], preferred_element_type=jnp.float32)
    y = jnp.maximum(y + b2_ref[...], 0.0)
    # Layer 2 (readout): Linear, no activation
    y = jnp.dot(y.astype(w3_ref.dtype), w3_ref[...], preferred_element_type=jnp.float32)
    y = y + b3_ref[...]
    o_ref[...] = y.astype(o_ref.dtype)


@functools.partial(jax.jit, static_argnames=("tm", "compute_dtype", "max_fold"))
def mlp_readout(x, params, *, tm=2048, compute_dtype=jnp.bfloat16, max_fold=4):
    """x: (N, input_dim) float32. params: [(W, b)] * 3 with W stored as (in, out)."""
    (w1, b1), (w2, b2), (w3, b3) = params
    n, in_dim = x.shape
    out_dim = w3.shape[1]
    out_dtype = x.dtype

    # ---- Lane-fold: pack `fold` consecutive batch rows into the lane dim ----
    fold = max(1, max_fold)
    while fold > 1 and n % fold != 0:
        fold //= 2

    n_rows = n // fold
    in_dim_f = fold * in_dim
    out_dim_f = fold * out_dim

    # Contiguous reshape: pure metadata, no HBM pass over x.
    xf = x.reshape(n_rows, in_dim_f)

    def fold_w(w):
        # Block-diagonal expansion; tiny (<= 128x64) so this is negligible.
        return jnp.kron(jnp.eye(fold, dtype=w.dtype), w).astype(compute_dtype)

    def fold_b(b):
        return jnp.tile(b.astype(jnp.float32), (1, fold))

    w1f, w2f, w3f = fold_w(w1), fold_w(w2), fold_w(w3)
    b1f, b2f, b3f = fold_b(b1), fold_b(b2), fold_b(b3)

    # ---- Row tiling (folded rows) ----
    # Large tiles for big DMAs, but capped so large-N grids have >= ~4 steps
    # (lets "parallel" shard rows across both TensorCores on v7x).  Ragged last
    # blocks are handled by Pallas write-masking; no wrapper-side padding.
    tm_eff = max(8, min(tm, _round_up(_cdiv(n_rows, 4), 8)))
    grid = (_cdiv(n_rows, tm_eff),)

    def row_spec(d):
        return pl.BlockSpec((tm_eff, d), lambda i: (i, 0))

    def resident_spec(arr):
        return pl.BlockSpec(arr.shape, lambda i: (0, 0))

    flops = 2 * n_rows * (
        w1f.shape[0] * w1f.shape[1]
        + w2f.shape[0] * w2f.shape[1]
        + w3f.shape[0] * w3f.shape[1]
    )
    bytes_accessed = (
        xf.size * xf.dtype.itemsize
        + n_rows * out_dim_f * jnp.dtype(out_dtype).itemsize
        + sum(a.size * a.dtype.itemsize for a in (w1f, w2f, w3f, b1f, b2f, b3f))
    )

    out = pl.pallas_call(
        mlp_readout_kernel,
        out_shape=jax.ShapeDtypeStruct((n_rows, out_dim_f), out_dtype),
        grid=grid,
        in_specs=[
            row_spec(in_dim_f),
            resident_spec(w1f), resident_spec(b1f),
            resident_spec(w2f), resident_spec(b2f),
            resident_spec(w3f), resident_spec(b3f),
        ],
        out_specs=row_spec(out_dim_f),
        compiler_params=pltpu.CompilerParams(
            dimension_semantics=("parallel",),
            vmem_limit_bytes=32 * 1024 * 1024,
        ),
        cost_estimate=pl.CostEstimate(
            flops=flops, transcendentals=0, bytes_accessed=bytes_accessed
        ),
    )(xf, w1f, b1f, w2f, b2f, w3f, b3f)

    # Contiguous reshape back to the module's (N, out_dim) contract.
    return out.reshape(n, out_dim)


def init_mlp_readout_params(key, input_dim, output_dim, L=2):
    """Deterministic init mimicking nn.Linear default (uniform +/- 1/sqrt(fan_in)).
    decreasing_dim=True branch: dims input_dim -> input_dim//2 -> ... -> output_dim."""
    dims = [input_dim // (2 ** l) for l in range(L + 1)] + [output_dim]
    params = []
    for l in range(L + 1):
        fan_in, fan_out = dims[l], dims[l + 1]
        key, kw, kb = jax.random.split(key, 3)
        bound = 1.0 / (fan_in ** 0.5)
        # Stored already transposed relative to PyTorch: (in, out)
        w = jax.random.uniform(kw, (fan_in, fan_out), jnp.float32, -bound, bound)
        b = jax.random.uniform(kb, (1, fan_out), jnp.float32, -bound, bound)
        params.append((w, b))
    return tuple(params)


def mlp_readout_ref(x, params, compute_dtype=jnp.float32):
    """Pure-JAX reference (unfolded), mirroring the kernel's cast discipline."""
    (w1, b1), (w2, b2), (w3, b3) = params
    cd = compute_dtype
    y = jnp.dot(x.astype(cd), w1.astype(cd), preferred_element_type=jnp.float32) + b1
    y = jnp.maximum(y, 0.0)
    y = jnp.dot(y.astype(cd), w2.astype(cd), preferred_element_type=jnp.float32) + b2
    y = jnp.maximum(y, 0.0)
    y = jnp.dot(y.astype(cd), w3.astype(cd), preferred_element_type=jnp.float32) + b3
    return y.astype(x.dtype)


if __name__ == "__main__":
    key = jax.random.PRNGKey(0)
    input_dim, output_dim, L = 32, 4, 2

    kx, kx2, kx3, kp = jax.random.split(key, 4)
    params = init_mlp_readout_params(kp, input_dim, output_dim, L=L)

    # --- Small case (matches the module's toy test): batch=8 -------------
    batch = 8
    x = jax.random.normal(kx, (batch, input_dim), jnp.float32)

    # f32 compute path: exact check against the f32 reference (block-diagonal
    # folding adds exact zeros, so results are bit-compatible to tolerance).
    out_f32 = jax.block_until_ready(mlp_readout(x, params, compute_dtype=jnp.float32))
    ref_f32 = mlp_readout_ref(x, params, compute_dtype=jnp.float32)
    assert out_f32.shape == (batch, output_dim)
    assert jnp.allclose(out_f32, ref_f32, atol=1e-5, rtol=1e-5)

    # bf16 compute path (the optimized / production default).
    out_bf16 = jax.block_until_ready(mlp_readout(x, params))
    ref_bf16 = mlp_readout_ref(x, params, compute_dtype=jnp.bfloat16)
    assert jnp.allclose(out_bf16, ref_bf16, atol=1e-3, rtol=1e-3)
    assert jnp.allclose(out_bf16, ref_f32, atol=5e-2, rtol=5e-2)

    # --- Larger batch: exercises the lane-fold, the >=4-step row grid and the
    # ragged last block (625 folded rows, tile 160). -------------------------
    batch2 = 2500
    x2 = jax.random.normal(kx2, (batch2, input_dim), jnp.float32)
    out2 = jax.block_until_ready(mlp_readout(x2, params))
    ref2 = mlp_readout_ref(x2, params, compute_dtype=jnp.bfloat16)
    assert out2.shape == (batch2, output_dim)
    assert jnp.allclose(out2, ref2, atol=1e-3, rtol=1e-3)

    # --- Odd batch (not divisible by 4): falls back to a smaller fold, still
    # no wrapper-side padding. ------------------------------------------------
    batch3 = 1001
    x3 = jax.random.normal(kx3, (batch3, input_dim), jnp.float32)
    out3 = jax.block_until_ready(mlp_readout(x3, params))
    ref3 = mlp_readout_ref(x3, params, compute_dtype=jnp.bfloat16)
    assert out3.shape == (batch3, output_dim)
    assert jnp.allclose(out3, ref3, atol=1e-3, rtol=1e-3)

    print("KERNEL_OK")
</pallas_src>

<mosaic_0001>
module attributes {stable_mosaic.version = 11 : i64} {
  func.func @mlp_readout_kernel(%arg0: i32, %arg1: memref<8x128xf32, #tpu.memory_space<vmem>>, %arg2: memref<128x64xf32, #tpu.memory_space<vmem>>, %arg3: memref<1x64xf32, #tpu.memory_space<vmem>>, %arg4: memref<64x32xf32, #tpu.memory_space<vmem>>, %arg5: memref<1x32xf32, #tpu.memory_space<vmem>>, %arg6: memref<32x16xf32, #tpu.memory_space<vmem>>, %arg7: memref<1x16xf32, #tpu.memory_space<vmem>>, %arg8: memref<8x16xf32, #tpu.memory_space<vmem>>) attributes {dimension_semantics = [#tpu.dimension_semantics<parallel>], iteration_bounds = array<i64: 1>, scalar_prefetch = 0 : i64, scratch_operands = 0 : i64, tpu.core_type = #tpu.core_type<tc>, window_params = [{transform_indices = @transform_0, window_bounds = array<i64: 8, 128>}, {pipeline_mode = #tpu.pipeline_mode<synchronous>, transform_indices = @transform_1, window_bounds = array<i64: 128, 64>}, {pipeline_mode = #tpu.pipeline_mode<synchronous>, transform_indices = @transform_2, window_bounds = array<i64: 1, 64>}, {pipeline_mode = #tpu.pipeline_mode<synchronous>, transform_indices = @transform_3, window_bounds = array<i64: 64, 32>}, {pipeline_mode = #tpu.pipeline_mode<synchronous>, transform_indices = @transform_4, window_bounds = array<i64: 1, 32>}, {pipeline_mode = #tpu.pipeline_mode<synchronous>, transform_indices = @transform_5, window_bounds = array<i64: 32, 16>}, {pipeline_mode = #tpu.pipeline_mode<synchronous>, transform_indices = @transform_6, window_bounds = array<i64: 1, 16>}, {transform_indices = @transform_7, window_bounds = array<i64: 8, 16>}]} {
    %c0 = arith.constant 0 : index
    %c0_0 = arith.constant 0 : index
    %0 = vector.load %arg1[%c0, %c0_0] : memref<8x128xf32, #tpu.memory_space<vmem>>, vector<8x128xf32>
    %c0_1 = arith.constant 0 : index
    %c0_2 = arith.constant 0 : index
    %1 = vector.load %arg2[%c0_1, %c0_2] : memref<128x64xf32, #tpu.memory_space<vmem>>, vector<128x64xf32>
    %cst = arith.constant dense<0.000000e+00> : vector<8x64xf32>
    %2 = tpu.matmul %0, %1, %cst {dimension_numbers = #tpu.dot_dimension_numbers<[1], [0], [0], [1], [0, 0, 1, 1], [], []>} : vector<8x128xf32>, vector<128x64xf32>, vector<8x64xf32> -> vector<8x64xf32>
    %c0_3 = arith.constant 0 : index
    %c0_4 = arith.constant 0 : index
    %3 = vector.load %arg3[%c0_3, %c0_4] : memref<1x64xf32, #tpu.memory_space<vmem>>, vector<1x64xf32>
    %4 = vector.broadcast %3 : vector<1x64xf32> to vector<8x64xf32>
    %5 = arith.addf %2, %4 : vector<8x64xf32>
    %cst_5 = arith.constant 0.000000e+00 : f32
    %6 = vector.broadcast %cst_5 : f32 to vector<8x64xf32>
    %7 = arith.maximumf %5, %6 : vector<8x64xf32>
    %c0_6 = arith.constant 0 : index
    %c0_7 = arith.constant 0 : index
    %8 = vector.load %arg4[%c0_6, %c0_7] : memref<64x32xf32, #tpu.memory_space<vmem>>, vector<64x32xf32>
    %cst_8 = arith.constant dense<0.000000e+00> : vector<8x32xf32>
    %9 = tpu.matmul %7, %8, %cst_8 {dimension_numbers = #tpu.dot_dimension_numbers<[1], [0], [0], [1], [0, 0, 1, 1], [], []>} : vector<8x64xf32>, vector<64x32xf32>, vector<8x32xf32> -> vector<8x32xf32>
    %c0_9 = arith.constant 0 : index
    %c0_10 = arith.constant 0 : index
    %10 = vector.load %arg5[%c0_9, %c0_10] : memref<1x32xf32, #tpu.memory_space<vmem>>, vector<1x32xf32>
    %11 = vector.broadcast %10 : vector<1x32xf32> to vector<8x32xf32>
    %12 = arith.addf %9, %11 : vector<8x32xf32>
    %cst_11 = arith.constant 0.000000e+00 : f32
    %13 = vector.broadcast %cst_11 : f32 to vector<8x32xf32>
    %14 = arith.maximumf %12, %13 : vector<8x32xf32>
    %c0_12 = arith.constant 0 : index
    %c0_13 = arith.constant 0 : index
    %15 = vector.load %arg6[%c0_12, %c0_13] : memref<32x16xf32, #tpu.memory_space<vmem>>, vector<32x16xf32>
    %cst_14 = arith.constant dense<0.000000e+00> : vector<8x16xf32>
    %16 = tpu.matmul %14, %15, %cst_14 {dimension_numbers = #tpu.dot_dimension_numbers<[1], [0], [0], [1], [0, 0, 1, 1], [], []>} : vector<8x32xf32>, vector<32x16xf32>, vector<8x16xf32> -> vector<8x16xf32>
    %c0_15 = arith.constant 0 : index
    %c0_16 = arith.constant 0 : index
    %17 = vector.load %arg7[%c0_15, %c0_16] : memref<1x16xf32, #tpu.memory_space<vmem>>, vector<1x16xf32>
    %18 = vector.broadcast %17 : vector<1x16xf32> to vector<8x16xf32>
    %19 = arith.addf %16, %18 : vector<8x16xf32>
    %c0_17 = arith.constant 0 : index
    %c0_18 = arith.constant 0 : index
    %20 = vector.load %arg8[%c0_17, %c0_18] : memref<8x16xf32, #tpu.memory_space<vmem>>, vector<8x16xf32>
    tpu.vector_store %arg8[%c0_17, %c0_18], %19 {strides = array<i32>} : memref<8x16xf32, #tpu.memory_space<vmem>>, vector<8x16xf32>,
    return
  }
  func.func @transform_0(%arg0: i32) -> (i32, i32) {
    %c0_i32 = arith.constant 0 : i32
    %c0_i32_0 = arith.constant 0 : i32
    return %arg0, %c0_i32 : i32, i32
  }
  func.func @transform_1(%arg0: i32) -> (i32, i32) {
    %c0_i32 = arith.constant 0 : i32
    %c0_i32_0 = arith.constant 0 : i32
    %c0_i32_1 = arith.constant 0 : i32
    return %c0_i32, %c0_i32_0 : i32, i32
  }
  func.func @transform_2(%arg0: i32) -> (i32, i32) {
    %c0_i32 = arith.constant 0 : i32
    %c0_i32_0 = arith.constant 0 : i32
    %c0_i32_1 = arith.constant 0 : i32
    return %c0_i32, %c0_i32_0 : i32, i32
  }
  func.func @transform_3(%arg0: i32) -> (i32, i32) {
    %c0_i32 = arith.constant 0 : i32
    %c0_i32_0 = arith.constant 0 : i32
    %c0_i32_1 = arith.constant 0 : i32
    return %c0_i32, %c0_i32_0 : i32, i32
  }
  func.func @transform_4(%arg0: i32) -> (i32, i32) {
    %c0_i32 = arith.constant 0 : i32
    %c0_i32_0 = arith.constant 0 : i32
    %c0_i32_1 = arith.constant 0 : i32
    return %c0_i32, %c0_i32_0 : i32, i32
  }
  func.func @transform_5(%arg0: i32) -> (i32, i32) {
    %c0_i32 = arith.constant 0 : i32
    %c0_i32_0 = arith.constant 0 : i32
    %c0_i32_1 = arith.constant 0 : i32
    return %c0_i32, %c0_i32_0 : i32, i32
  }
  func.func @transform_6(%arg0: i32) -> (i32, i32) {
    %c0_i32 = arith.constant 0 : i32
    %c0_i32_0 = arith.constant 0 : i32
    %c0_i32_1 = arith.constant 0 : i32
    return %c0_i32, %c0_i32_0 : i32, i32
  }
  func.func @transform_7(%arg0: i32) -> (i32, i32) {
    %c0_i32 = arith.constant 0 : i32
    %c0_i32_0 = arith.constant 0 : i32
    return %arg0, %c0_i32 : i32, i32
  }
}

</mosaic_0001>

<llo_original>
// kernel: mlp_readout.1
$region0: #{mlp_readout.1}
  #allocation0 [shape = 'u32[]', space=smem, size = 0x4, offset = 0x4, fixed_abs, tag = 'smem constant byte address 0x4 - core index']
  #allocation1 [shape = 'u32[144,128]{1,0:T(1,128)}', space=vmem, size = 0x12000, scoped, tag = 'internal scratch']
  %s0 = inlined_call_operand.vmem [shape: f32[2,128], index: 0, kind: input, shape index: {}]
  %s1 = inlined_call_operand.vmem [shape: f32[128,64], index: 1, kind: input, shape index: {}]
  %s2 = inlined_call_operand.vmem [shape: f32[1,64], index: 2, kind: input, shape index: {}]
  %s3 = inlined_call_operand.vmem [shape: f32[64,32], index: 3, kind: input, shape index: {}]
  %s4 = inlined_call_operand.vmem [shape: f32[1,32], index: 4, kind: input, shape index: {}]
  %s5 = inlined_call_operand.vmem [shape: f32[32,16], index: 5, kind: input, shape index: {}]
  %s6 = inlined_call_operand.vmem [shape: f32[1,16], index: 6, kind: input, shape index: {}]
  %s7 = inlined_call_operand.vmem [shape: f32[2,16], index: 7, kind: output, shape index: {}]
  %s8 = sld [smem:[#allocation0]]
  $region68: #{mlp_readout.1} parent=0
    _
  %s10 = ssub.s32 1, %s8
  %s11 = scalar_select 0, %s10, %s8
  $region1: #{mlp_readout.1} parent=0
    #allocation2 [shape = 'u8[4096]{0}', space=vmem, size = 0x1000, scoped, tag = 'output window, operand 0, single buffered']
    // Predicated region
    $region2: #{mlp_readout.1} parent=1 // pred_check
      _
    $region3: #{mlp_readout.1} parent=1 // pred_check_branch
      %13 = sbr.rel (0) target = $region5
    $region4: #{mlp_readout.1} parent=1 // pred_region
      _
    $region5: #{mlp_readout.1} parent=1 // pred_fallthru
      _
    // Predicated region
    $region6: #{mlp_readout.1} parent=1 // pred_check
      _
    $region7: #{mlp_readout.1} parent=1 // pred_check_branch
      %15 = sbr.rel (0) target = $region9
    $region8: #{mlp_readout.1} parent=1 // pred_region
      _
    $region9: #{mlp_readout.1} parent=1 // pred_fallthru
      _
    // Predicated region
    $region10: #{mlp_readout.1} parent=1 // pred_check
      _
    $region11: #{mlp_readout.1} parent=1 // pred_check_branch
      %17 = sbr.rel (0) target = $region13
    $region12: #{mlp_readout.1} parent=1 // pred_region
      _
    $region13: #{mlp_readout.1} parent=1 // pred_fallthru
      _
    // Predicated region
    $region14: #{mlp_readout.1} parent=1 // pred_check
      _
    $region15: #{mlp_readout.1} parent=1 // pred_check_branch
      %19 = sbr.rel (0) target = $region17
    $region16: #{mlp_readout.1} parent=1 // pred_region
      _
    $region17: #{mlp_readout.1} parent=1 // pred_fallthru
      _
    // Predicated region
    $region18: #{mlp_readout.1} parent=1 // pred_check
      _
    $region19: #{mlp_readout.1} parent=1 // pred_check_branch
      %21 = sbr.rel (0) target = $region21
    $region20: #{mlp_readout.1} parent=1 // pred_region
      _
    $region21: #{mlp_readout.1} parent=1 // pred_fallthru
      _
    // Predicated region
    $region22: #{mlp_readout.1} parent=1 // pred_check
      _
    $region23: #{mlp_readout.1} parent=1 // pred_check_branch
      %23 = sbr.rel (0) target = $region25
    $region24: #{mlp_readout.1} parent=1 // pred_region
      _
    $region25: #{mlp_readout.1} parent=1 // pred_fallthru
      _
    // Predicated region
    $region26: #{mlp_readout.1} parent=1 // pred_check
      _
    $region27: #{mlp_readout.1} parent=1 // pred_check_branch
      %25 = sbr.rel (0) target = $region29
    $region28: #{mlp_readout.1} parent=1 // pred_region
      _
    $region29: #{mlp_readout.1} parent=1 // pred_fallthru
      _
    %v26 = vld [vmem:[%s0] sm:$0xff]
    %v27 = vld [vmem:[%s1] sm:$0xff]
    %v28 = vld [vmem:[%s1 + $0x8] sm:$0xff]
    %v29 = vld [vmem:[%s1 + $0x10] sm:$0xff]
    %v30 = vld [vmem:[%s1 + $0x18] sm:$0xff]
    %v31 = vld [vmem:[%s1 + $0x20] sm:$0xff]
    %v32 = vld [vmem:[%s1 + $0x28] sm:$0xff]
    %v33 = vld [vmem:[%s1 + $0x30] sm:$0xff]
    %v34 = vld [vmem:[%s1 + $0x38] sm:$0xff]
    %v35 = vld [vmem:[%s1 + $0x40] sm:$0xff]
    %v36 = vld [vmem:[%s1 + $0x48] sm:$0xff]
    %v37 = vld [vmem:[%s1 + $0x50] sm:$0xff]
    %v38 = vld [vmem:[%s1 + $0x58] sm:$0xff]
    %v39 = vld [vmem:[%s1 + $0x60] sm:$0xff]
    %v40 = vld [vmem:[%s1 + $0x68] sm:$0xff]
    %v41 = vld [vmem:[%s1 + $0x70] sm:$0xff]
    %v42 = vld [vmem:[%s1 + $0x78] sm:$0xff]
    %v43 = vld [vmem:[%s2] sm:$0x1]
    %v45 = vlaneseq
    %v46 = vshrl.u32 %v45, 7
    %v47 = vsub.s32 0, %v46
    %v48 = vrot.slane %v43, %v47
    %50 = vmatprep.subr.mxu0 0.0
    %51 = vmatpush1.msra.mxu0 %v42
    %52 = vmatprep.subr.mxu0 0.0
    %53 = vmatpush1.msra.mxu0 %v41
    %54 = vmatprep.subr.mxu0 0.0
    %55 = vmatpush1.msra.mxu0 %v40
    %56 = vmatprep.subr.mxu0 0.0
    %57 = vmatpush1.msra.mxu0 %v39
    %58 = vmatprep.subr.mxu0 0.0
    %59 = vmatpush1.msra.mxu0 %v38
    %60 = vmatprep.subr.mxu0 0.0
    %61 = vmatpush1.msra.mxu0 %v37
    %62 = vmatprep.subr.mxu0 0.0
    %63 = vmatpush1.msra.mxu0 %v36
    %64 = vmatprep.subr.mxu0 0.0
    %65 = vmatpush1.msra.mxu0 %v35
    %66 = vmatprep.subr.mxu0 0.0
    %67 = vmatpush1.msra.mxu0 %v34
    %68 = vmatprep.subr.mxu0 0.0
    %69 = vmatpush1.msra.mxu0 %v33
    %70 = vmatprep.subr.mxu0 0.0
    %71 = vmatpush1.msra.mxu0 %v32
    %72 = vmatprep.subr.mxu0 0.0
    %73 = vmatpush1.msra.mxu0 %v31
    %74 = vmatprep.subr.mxu0 0.0
    %75 = vmatpush1.msra.mxu0 %v30
    %76 = vmatprep.subr.mxu0 0.0
    %77 = vmatpush1.msra.mxu0 %v29
    %78 = vmatprep.subr.mxu0 0.0
    %79 = vmatpush1.msra.mxu0 %v28
    %80 = vmatprep.subr.mxu0 0.0
    %81 = vmatpush1.msra.mxu0 %v27
    %82 = vmatprep.subr.mxu0 0.0
    %83 = vmatpush2.msra.mxu0 0.0
    %84 = vmatprep.subr.mxu0 0.0
    %85 = vmatpush2.msra.mxu0 0.0
    %86 = vmatprep.subr.mxu0 0.0
    %87 = vmatpush2.msra.mxu0 0.0
    %88 = vmatprep.subr.mxu0 0.0
    %89 = vmatpush2.msra.mxu0 0.0
    %90 = vmatprep.subr.mxu0 0.0
    %91 = vmatpush2.msra.mxu0 0.0
    %92 = vmatprep.subr.mxu0 0.0
    %93 = vmatpush2.msra.mxu0 0.0
    %94 = vmatprep.subr.mxu0 0.0
    %95 = vmatpush2.msra.mxu0 0.0
    %96 = vmatprep.subr.mxu0 0.0
    %97 = vmatpush2.msra.mxu0 0.0
    %98 = vmatprep.subr.mxu0 0.0
    %99 = vmatpush2.msra.mxu0 0.0
    %100 = vmatprep.subr.mxu0 0.0
    %101 = vmatpush2.msra.mxu0 0.0
    %102 = vmatprep.subr.mxu0 0.0
    %103 = vmatpush2.msra.mxu0 0.0
    %104 = vmatprep.subr.mxu0 0.0
    %105 = vmatpush2.msra.mxu0 0.0
    %106 = vmatprep.subr.mxu0 0.0
    %107 = vmatpush2.msra.mxu0 0.0
    %108 = vmatprep.subr.mxu0 0.0
    %109 = vmatpush2.msra.mxu0 0.0
    %110 = vmatprep.subr.mxu0 0.0
    %111 = vmatpush2.msra.mxu0 0.0
    %112 = vmatprep.subr.mxu0 0.0
    %113 = vmatpush2.msra.mxu0 0.0
    %114 = vmatprep.mubr.f32.mxu0 0.0
    %115 = vmatmul.mubr.f32.gmra.mxu0 %v26
    %v116 = vpop.f32.mrf.mxu0
    %v117 = vadd.f32 %v48, %v116
    %v118 = vpop.f32.mrf.mxu0
    %119 = vdwg.mxu0
    %v120 = vmax.f32 %v117, 0.0
    %v121 = vld [vmem:[%s3] sm:$0xff]
    %v122 = vld [vmem:[%s3 + $0x8] sm:$0xff]
    %v123 = vld [vmem:[%s3 + $0x10] sm:$0xff]
    %v124 = vld [vmem:[%s3 + $0x18] sm:$0xff]
    %v125 = vld [vmem:[%s3 + $0x20] sm:$0xff]
    %v126 = vld [vmem:[%s3 + $0x28] sm:$0xff]
    %v127 = vld [vmem:[%s3 + $0x30] sm:$0xff]
    %v128 = vld [vmem:[%s3 + $0x38] sm:$0xff]
    %v129 = vld [vmem:[%s4] sm:$0x1]
    %v131 = vlaneseq
    %v132 = vshrl.u32 %v131, 7
    %v133 = vsub.s32 0, %v132
    %v134 = vrot.slane %v129, %v133
    %vm136 = vcmask 523264
    %v138 = vsel %vm136, %v120, 0
    %140 = vmatprep.subr.mxu0 0.0
    %141 = vmatpush1.msra.mxu0 0.0
    %142 = vmatprep.subr.mxu0 0.0
    %143 = vmatpush1.msra.mxu0 0.0
    %144 = vmatprep.subr.mxu0 0.0
    %145 = vmatpush1.msra.mxu0 0.0
    %146 = vmatprep.subr.mxu0 0.0
    %147 = vmatpush1.msra.mxu0 0.0
    %148 = vmatprep.subr.mxu0 0.0
    %149 = vmatpush1.msra.mxu0 0.0
    %150 = vmatprep.subr.mxu0 0.0
    %151 = vmatpush1.msra.mxu0 0.0
    %152 = vmatprep.subr.mxu0 0.0
    %153 = vmatpush1.msra.mxu0 0.0
    %154 = vmatprep.subr.mxu0 0.0
    %155 = vmatpush1.msra.mxu0 0.0
    %156 = vmatprep.subr.mxu0 0.0
    %157 = vmatpush1.msra.mxu0 %v128
    %158 = vmatprep.subr.mxu0 0.0
    %159 = vmatpush1.msra.mxu0 %v127
    %160 = vmatprep.subr.mxu0 0.0
    %161 = vmatpush1.msra.mxu0 %v126
    %162 = vmatprep.subr.mxu0 0.0
    %163 = vmatpush1.msra.mxu0 %v125
    %164 = vmatprep.subr.mxu0 0.0
    %165 = vmatpush1.msra.mxu0 %v124
    %166 = vmatprep.subr.mxu0 0.0
    %167 = vmatpush1.msra.mxu0 %v123
    %168 = vmatprep.subr.mxu0 0.0
    %169 = vmatpush1.msra.mxu0 %v122
    %170 = vmatprep.subr.mxu0 0.0
    %171 = vmatpush1.msra.mxu0 %v121
    %172 = vmatprep.subr.mxu0 0.0
    %173 = vmatpush2.msra.mxu0 0.0
    %174 = vmatprep.subr.mxu0 0.0
    %175 = vmatpush2.msra.mxu0 0.0
    %176 = vmatprep.subr.mxu0 0.0
    %177 = vmatpush2.msra.mxu0 0.0
    %178 = vmatprep.subr.mxu0 0.0
    %179 = vmatpush2.msra.mxu0 0.0
    %180 = vmatprep.subr.mxu0 0.0
    %181 = vmatpush2.msra.mxu0 0.0
    %182 = vmatprep.subr.mxu0 0.0
    %183 = vmatpush2.msra.mxu0 0.0
    %184 = vmatprep.subr.mxu0 0.0
    %185 = vmatpush2.msra.mxu0 0.0
    %186 = vmatprep.subr.mxu0 0.0
    %187 = vmatpush2.msra.mxu0 0.0
    %188 = vmatprep.subr.mxu0 0.0
    %189 = vmatpush2.msra.mxu0 0.0
    %190 = vmatprep.subr.mxu0 0.0
    %191 = vmatpush2.msra.mxu0 0.0
    %192 = vmatprep.subr.mxu0 0.0
    %193 = vmatpush2.msra.mxu0 0.0
    %194 = vmatprep.subr.mxu0 0.0
    %195 = vmatpush2.msra.mxu0 0.0
    %196 = vmatprep.subr.mxu0 0.0
    %197 = vmatpush2.msra.mxu0 0.0
    %198 = vmatprep.subr.mxu0 0.0
    %199 = vmatpush2.msra.mxu0 0.0
    %200 = vmatprep.subr.mxu0 0.0
    %201 = vmatpush2.msra.mxu0 0.0
    %202 = vmatprep.subr.mxu0 0.0
    %203 = vmatpush2.msra.mxu0 0.0
    %204 = vmatprep.mubr.f32.mxu0 0.0
    %205 = vmatmul.mubr.f32.gmra.mxu0 %v138
    %v206 = vpop.f32.mrf.mxu0
    %v207 = vadd.f32 %v134, %v206
    %v208 = vpop.f32.mrf.mxu0
    %209 = vdwg.mxu0
    %v210 = vmax.f32 %v207, 0.0
    %v211 = vld [vmem:[%s5] sm:$0xff]
    %v212 = vld [vmem:[%s5 + $0x8] sm:$0xff]
    %v213 = vld [vmem:[%s5 + $0x10] sm:$0xff]
    %v214 = vld [vmem:[%s5 + $0x18] sm:$0xff]
    %v215 = vld [vmem:[%s6] sm:$0x1]
    %v217 = vlaneseq
    %v218 = vshrl.u32 %v217, 7
    %v219 = vsub.s32 0, %v218
    %v220 = vrot.slane %v215, %v219
    %vm222 = vcmask 261120
    %v224 = vsel %vm222, %v210, 0
    %226 = vmatprep.subr.mxu0 0.0
    %227 = vmatpush1.msra.mxu0 0.0
    %228 = vmatprep.subr.mxu0 0.0
    %229 = vmatpush1.msra.mxu0 0.0
    %230 = vmatprep.subr.mxu0 0.0
    %231 = vmatpush1.msra.mxu0 0.0
    %232 = vmatprep.subr.mxu0 0.0
    %233 = vmatpush1.msra.mxu0 0.0
    %234 = vmatprep.subr.mxu0 0.0
    %235 = vmatpush1.msra.mxu0 0.0
    %236 = vmatprep.subr.mxu0 0.0
    %237 = vmatpush1.msra.mxu0 0.0
    %238 = vmatprep.subr.mxu0 0.0
    %239 = vmatpush1.msra.mxu0 0.0
    %240 = vmatprep.subr.mxu0 0.0
    %241 = vmatpush1.msra.mxu0 0.0
    %242 = vmatprep.subr.mxu0 0.0
    %243 = vmatpush1.msra.mxu0 0.0
    %244 = vmatprep.subr.mxu0 0.0
    %245 = vmatpush1.msra.mxu0 0.0
    %246 = vmatprep.subr.mxu0 0.0
    %247 = vmatpush1.msra.mxu0 0.0
    %248 = vmatprep.subr.mxu0 0.0
    %249 = vmatpush1.msra.mxu0 0.0
    %250 = vmatprep.subr.mxu0 0.0
    %251 = vmatpush1.msra.mxu0 %v214
    %252 = vmatprep.subr.mxu0 0.0
    %253 = vmatpush1.msra.mxu0 %v213
    %254 = vmatprep.subr.mxu0 0.0
    %255 = vmatpush1.msra.mxu0 %v212
    %256 = vmatprep.subr.mxu0 0.0
    %257 = vmatpush1.msra.mxu0 %v211
    %258 = vmatprep.subr.mxu0 0.0
    %259 = vmatpush2.msra.mxu0 0.0
    %260 = vmatprep.subr.mxu0 0.0
    %261 = vmatpush2.msra.mxu0 0.0
    %262 = vmatprep.subr.mxu0 0.0
    %263 = vmatpush2.msra.mxu0 0.0
    %264 = vmatprep.subr.mxu0 0.0
    %265 = vmatpush2.msra.mxu0 0.0
    %266 = vmatprep.subr.mxu0 0.0
    %267 = vmatpush2.msra.mxu0 0.0
    %268 = vmatprep.subr.mxu0 0.0
    %269 = vmatpush2.msra.mxu0 0.0
    %270 = vmatprep.subr.mxu0 0.0
    %271 = vmatpush2.msra.mxu0 0.0
    %272 = vmatprep.subr.mxu0 0.0
    %273 = vmatpush2.msra.mxu0 0.0
    %274 = vmatprep.subr.mxu0 0.0
    %275 = vmatpush2.msra.mxu0 0.0
    %276 = vmatprep.subr.mxu0 0.0
    %277 = vmatpush2.msra.mxu0 0.0
    %278 = vmatprep.subr.mxu0 0.0
    %279 = vmatpush2.msra.mxu0 0.0
    %280 = vmatprep.subr.mxu0 0.0
    %281 = vmatpush2.msra.mxu0 0.0
    %282 = vmatprep.subr.mxu0 0.0
    %283 = vmatpush2.msra.mxu0 0.0
    %284 = vmatprep.subr.mxu0 0.0
    %285 = vmatpush2.msra.mxu0 0.0
    %286 = vmatprep.subr.mxu0 0.0
    %287 = vmatpush2.msra.mxu0 0.0
    %288 = vmatprep.subr.mxu0 0.0
    %289 = vmatpush2.msra.mxu0 0.0
    %290 = vmatprep.mubr.f32.mxu0 0.0
    %291 = vmatmul.mubr.f32.gmra.mxu0 %v224
    %v292 = vpop.f32.mrf.mxu0
    %v293 = vadd.f32 %v220, %v292
    %v294 = vpop.f32.mrf.mxu0
    %295 = vdwg.mxu0
    %vm296 = vcmask 130048
    %297 = vst.msk [vmem:[#allocation2] sm:$0xff] %vm296, %v293
    // Predicated region
    $region30: #{mlp_readout.1} parent=1 // pred_check
      _
    $region31: #{mlp_readout.1} parent=1 // pred_check_branch
      %299 = sbr.rel (0) target = $region33
    $region32: #{mlp_readout.1} parent=1 // pred_region
      // Predicated region
      $region34: #{mlp_readout.1} parent=32 // pred_check
        _
      $region35: #{mlp_readout.1} parent=32 // pred_check_branch
        %301 = sbr.rel (0) target = $region37
      $region36: #{mlp_readout.1} parent=32 // pred_region
        // Predicated region
        $region38: #{mlp_readout.1} parent=36 // pred_check
          _
        $region39: #{mlp_readout.1} parent=36 // pred_check_branch
          %303 = sbr.rel target = $region41
        $region40: #{mlp_readout.1} parent=36 // pred_region
          // Predicated region
          $region53: #{mlp_readout.1} parent=40 // pred_check
            _
          $region54: #{mlp_readout.1} parent=40 // pred_check_branch
            %319 = sbr.rel (0) target = $region56
          $region55: #{mlp_readout.1} parent=40 // pred_region
            %s321 = ssub.s32 4, 1
            loop: start=0, step=1, limit=1
            $region57: #{mlp_readout.1} parent=55 // loop_pre_header
              _
            $region58: #{mlp_readout.1} parent=55 // loop_header
              %s323 = sphi 0, %s327
              %p324 = scmp.ge.s32.totalorder %s323, 1
              %s328 = sphi [#allocation2], [#allocation2]
              %s329 = sphi %s7, %s7
            $region59: #{mlp_readout.1} parent=55 // loop_header_branch
              %326 = sbr.rel (%p324) target = $region63
            $region60: #{mlp_readout.1} parent=55 // loop_body
              %v330 = vld [vmem:[%s328] sm:%s321]
              %331 = vst [vmem:[%s329] sm:%s321] %v330
            $region61: #{mlp_readout.1} parent=55 // loop_footer
              %s327 = sadd.s32 1, %s323
            $region62: #{mlp_readout.1} parent=55 // loop_footer_branch
              %322 = sbr.rel target = $region58
            $region63: #{mlp_readout.1} parent=55 // loop_exit
              _
          $region56: #{mlp_readout.1} parent=40 // pred_fallthru
            _
        $region41: #{mlp_readout.1} parent=36 // pred_fallthru
          _
        // Predicated region
        $region42: #{mlp_readout.1} parent=36 // pred_check
          _
        $region43: #{mlp_readout.1} parent=36 // pred_check_branch
          %305 = sbr.rel (0) target = $region45
        $region44: #{mlp_readout.1} parent=36 // pred_region
          %s307 = ssub.s32 4, 1
          loop: start=0, step=1, limit=1
          $region46: #{mlp_readout.1} parent=44 // loop_pre_header
            _
          $region47: #{mlp_readout.1} parent=44 // loop_header
            %s309 = sphi 0, %s313
            %p310 = scmp.ge.s32.totalorder %s309, 1
            %s314 = sphi [#allocation2], [#allocation2]
            %s315 = sphi %s7, %s7
          $region48: #{mlp_readout.1} parent=44 // loop_header_branch
            %312 = sbr.rel (%p310) target = $region52
          $region49: #{mlp_readout.1} parent=44 // loop_body
            %v316 = vld [vmem:[%s314] sm:%s307]
            %317 = vst [vmem:[%s315] sm:%s307] %v316
          $region50: #{mlp_readout.1} parent=44 // loop_footer
            %s313 = sadd.s32 1, %s309
          $region51: #{mlp_readout.1} parent=44 // loop_footer_branch
            %308 = sbr.rel target = $region47
          $region52: #{mlp_readout.1} parent=44 // loop_exit
            _
        $region45: #{mlp_readout.1} parent=36 // pred_fallthru
          _
      $region37: #{mlp_readout.1} parent=32 // pred_fallthru
        _
      %332 = vnop
    $region33: #{mlp_readout.1} parent=1 // pred_fallthru
      _
    // Predicated region
    $region64: #{mlp_readout.1} parent=1 // pred_check
      _
    $region65: #{mlp_readout.1} parent=1 // pred_check_branch
      %334 = sbr.rel (0) target = $region67
    $region66: #{mlp_readout.1} parent=1 // pred_region
      _
    $region67: #{mlp_readout.1} parent=1 // pred_fallthru
      _

</llo_original>
